<compile_context>
chip_gen: v7x
topology: tpu7x:2x2x1
jax: 0.10.0
libtpu: 0.0.40
codegen_flags: <defaults>
</compile_context>

<pallas_src>
import numpy as np
import jax
import jax.numpy as jnp
from jax.experimental import pallas as pl
from jax.experimental.pallas import tpu as pltpu

# Problem sizes implied by the module.
N, C_IN, H, W = 1, 128, 7, 7
C_OUT, KH, KW = 32, 3, 3
HW = H * W                      # 49
NTAP = KH * KW                  # 9
PAD_OFF = (KH // 2) * W + (KW // 2)   # 8 == max |lane shift| over the 9 taps
SCRATCH_LANES = 128             # one full lane tile; reads stay within [0, 65)


def make_conv_consts(w_oihw):
    """One-time (init-time) weight / mask preparation. NOT in the per-call path."""
    w = np.asarray(w_oihw, dtype=np.float32)
    # W_all[(kh*KW+kw)*C_OUT + co, ci] = w[co, ci, kh, kw]
    w_all = np.transpose(w, (2, 3, 0, 1)).reshape(NTAP * C_OUT, C_IN)
    # Per-tap validity mask over flattened output positions p = h*W + w.
    masks = np.zeros((NTAP, HW), np.float32)
    for kh in range(KH):
        for kw in range(KW):
            dy, dx = kh - KH // 2, kw - KW // 2
            t = kh * KW + kw
            for h in range(H):
                for w_ in range(W):
                    if 0 <= h + dy < H and 0 <= w_ + dx < W:
                        masks[t, h * W + w_] = 1.0
    return jnp.asarray(w_all), jnp.asarray(masks)


def relu_conv_kernel(x_ref, w_ref, m_ref, o_ref, ps_ref):
    """ReLU + 3x3 same conv, channel-major.

    x_ref : [C_IN, HW]            activations (flattened NCHW), VMEM
    w_ref : [NTAP*C_OUT, C_IN]    per-tap stacked weights, VMEM
    m_ref : [NTAP, HW]            0/1 boundary masks per tap, VMEM
    o_ref : [C_OUT, HW]           output (flattened NCHW), VMEM
    ps_ref: [NTAP*C_OUT, 128]     lane-padded scratch for shifted tap reads
    """
    # ReLU (relu(0) == 0, so it commutes with the implicit zero padding).
    xf = jnp.maximum(x_ref[...], jnp.zeros((), x_ref.dtype))

    # Single MXU matmul: all 9 per-tap partial outputs at once -> [288, 49].
    p = jnp.dot(w_ref[...], xf, preferred_element_type=jnp.float32)

    # Lay the partials into a zero-bordered, lane-padded scratch so every tap
    # becomes a static shifted read; the zero borders realize the spatial pad.
    ps_ref[...] = jnp.zeros_like(ps_ref)
    ps_ref[:, PAD_OFF:PAD_OFF + HW] = p

    acc = jnp.zeros((C_OUT, HW), jnp.float32)
    for t in range(NTAP):                      # statically unrolled (9 taps)
        dy = t // KW - KH // 2
        dx = t % KW - KW // 2
        s = dy * W + dx                        # lane shift for this tap
        blk = ps_ref[t * C_OUT:(t + 1) * C_OUT,
                     PAD_OFF + s:PAD_OFF + s + HW]        # [C_OUT, HW]
        acc = acc + blk * m_ref[t:t + 1, :]    # mask kills row/col wrap-around
    o_ref[...] = acc.astype(o_ref.dtype)


@jax.jit
def relu_conv2d(x_nchw, w_all, masks):
    """x_nchw: [1, C_IN, H, W] f32; w_all: [NTAP*C_OUT, C_IN]; masks: [NTAP, HW]."""
    x2 = x_nchw.reshape(C_IN, HW)              # NCHW is already channel-major: free
    out2 = pl.pallas_call(
        relu_conv_kernel,
        out_shape=jax.ShapeDtypeStruct((C_OUT, HW), jnp.float32),
        in_specs=[
            pl.BlockSpec(memory_space=pltpu.MemorySpace.VMEM),
            pl.BlockSpec(memory_space=pltpu.MemorySpace.VMEM),
            pl.BlockSpec(memory_space=pltpu.MemorySpace.VMEM),
        ],
        out_specs=pl.BlockSpec(memory_space=pltpu.MemorySpace.VMEM),
        scratch_shapes=[pltpu.VMEM((NTAP * C_OUT, SCRATCH_LANES), jnp.float32)],
        cost_estimate=pl.CostEstimate(
            flops=2 * C_OUT * HW * KH * KW * C_IN,
            transcendentals=0,
            bytes_accessed=4 * (C_IN * HW + NTAP * C_OUT * C_IN
                                + NTAP * HW + C_OUT * HW),
        ),
        # TODO(synk): if this conv is batched / fused into a larger model, add a
        # grid with a "parallel" dimension so v7x's two TensorCores are used.
    )(x2, w_all, masks)
    return out2.reshape(N, C_OUT, H, W)        # free row-major reshape back to NCHW


if __name__ == "__main__":
    key = jax.random.PRNGKey(0)
    kx, kw = jax.random.split(key)

    # Deterministic synthetic input and weights (module defines the shapes).
    x = jax.random.normal(kx, (N, C_IN, H, W), dtype=jnp.float32)
    fan_in = C_IN * KH * KW
    bound = (1.0 / fan_in) ** 0.5
    w = jax.random.uniform(
        kw, (C_OUT, C_IN, KH, KW), dtype=jnp.float32, minval=-bound, maxval=bound
    )

    # One-time weight/mask preparation (hoisted out of the per-call path).
    w_all, masks = make_conv_consts(w)

    out = relu_conv2d(x, w_all, masks)
    out = jax.block_until_ready(out)

    # Correctness check against a pure-JAX reference.
    ref = jax.lax.conv_general_dilated(
        jnp.maximum(x, 0.0),
        w,
        window_strides=(1, 1),
        padding=((1, 1), (1, 1)),
        dimension_numbers=("NCHW", "OIHW", "NCHW"),
    )
    assert out.shape == (N, C_OUT, H, W), out.shape
    assert jnp.allclose(out, ref, atol=1e-3, rtol=1e-3), "mismatch vs reference"

    print("KERNEL_OK")
</pallas_src>

<mosaic_0001>
module attributes {stable_mosaic.version = 11 : i64} {
  func.func @relu_conv_kernel(%arg0: memref<128x49xf32, #tpu.memory_space<vmem>>, %arg1: memref<288x128xf32, #tpu.memory_space<vmem>>, %arg2: memref<9x49xf32, #tpu.memory_space<vmem>>, %arg3: memref<32x49xf32, #tpu.memory_space<vmem>>, %arg4: memref<288x128xf32, #tpu.memory_space<vmem>>) attributes {dimension_semantics = [], scalar_prefetch = 0 : i64, scratch_operands = 1 : i64, tpu.core_type = #tpu.core_type<tc>} {
    %c0 = arith.constant 0 : index
    %c0_0 = arith.constant 0 : index
    %0 = vector.load %arg0[%c0, %c0_0] : memref<128x49xf32, #tpu.memory_space<vmem>>, vector<128x49xf32>
    %cst = arith.constant 0.000000e+00 : f32
    %1 = vector.broadcast %cst : f32 to vector<128x49xf32>
    %2 = arith.maximumf %0, %1 : vector<128x49xf32>
    %c0_1 = arith.constant 0 : index
    %c0_2 = arith.constant 0 : index
    %3 = vector.load %arg1[%c0_1, %c0_2] : memref<288x128xf32, #tpu.memory_space<vmem>>, vector<288x128xf32>
    %cst_3 = arith.constant dense<0.000000e+00> : vector<288x49xf32>
    %4 = tpu.matmul %3, %2, %cst_3 {dimension_numbers = #tpu.dot_dimension_numbers<[1], [0], [0], [1], [0, 0, 1, 1], [], []>} : vector<288x128xf32>, vector<128x49xf32>, vector<288x49xf32> -> vector<288x49xf32>
    %cst_4 = arith.constant 0.000000e+00 : f32
    %5 = vector.broadcast %cst_4 : f32 to vector<288x128xf32>
    %c0_5 = arith.constant 0 : index
    %c0_6 = arith.constant 0 : index
    %6 = vector.load %arg4[%c0_5, %c0_6] : memref<288x128xf32, #tpu.memory_space<vmem>>, vector<288x128xf32>
    tpu.vector_store %arg4[%c0_5, %c0_6], %5 {strides = array<i32>} : memref<288x128xf32, #tpu.memory_space<vmem>>, vector<288x128xf32>,
    %c0_7 = arith.constant 0 : index
    %c8 = arith.constant 8 : index
    %7 = vector.load %arg4[%c0_7, %c8] : memref<288x128xf32, #tpu.memory_space<vmem>>, vector<288x49xf32>
    tpu.vector_store %arg4[%c0_7, %c8], %4 {strides = array<i32>} : memref<288x128xf32, #tpu.memory_space<vmem>>, vector<288x49xf32>,
    %cst_8 = arith.constant 0.000000e+00 : f32
    %8 = vector.broadcast %cst_8 : f32 to vector<32x49xf32>
    %c0_9 = arith.constant 0 : index
    %c0_10 = arith.constant 0 : index
    %9 = vector.load %arg4[%c0_9, %c0_10] : memref<288x128xf32, #tpu.memory_space<vmem>>, vector<32x49xf32>
    %c0_11 = arith.constant 0 : index
    %c0_12 = arith.constant 0 : index
    %10 = vector.load %arg2[%c0_11, %c0_12] : memref<9x49xf32, #tpu.memory_space<vmem>>, vector<1x49xf32>
    %11 = vector.broadcast %10 : vector<1x49xf32> to vector<32x49xf32>
    %12 = arith.mulf %9, %11 : vector<32x49xf32>
    %13 = arith.addf %8, %12 : vector<32x49xf32>
    %c32 = arith.constant 32 : index
    %c1 = arith.constant 1 : index
    %14 = vector.load %arg4[%c32, %c1] : memref<288x128xf32, #tpu.memory_space<vmem>>, vector<32x49xf32>
    %c1_13 = arith.constant 1 : index
    %c0_14 = arith.constant 0 : index
    %15 = vector.load %arg2[%c1_13, %c0_14] : memref<9x49xf32, #tpu.memory_space<vmem>>, vector<1x49xf32>
    %16 = vector.broadcast %15 : vector<1x49xf32> to vector<32x49xf32>
    %17 = arith.mulf %14, %16 : vector<32x49xf32>
    %18 = arith.addf %13, %17 : vector<32x49xf32>
    %c64 = arith.constant 64 : index
    %c2 = arith.constant 2 : index
    %19 = vector.load %arg4[%c64, %c2] : memref<288x128xf32, #tpu.memory_space<vmem>>, vector<32x49xf32>
    %c2_15 = arith.constant 2 : index
    %c0_16 = arith.constant 0 : index
    %20 = vector.load %arg2[%c2_15, %c0_16] : memref<9x49xf32, #tpu.memory_space<vmem>>, vector<1x49xf32>
    %21 = vector.broadcast %20 : vector<1x49xf32> to vector<32x49xf32>
    %22 = arith.mulf %19, %21 : vector<32x49xf32>
    %23 = arith.addf %18, %22 : vector<32x49xf32>
    %c96 = arith.constant 96 : index
    %c7 = arith.constant 7 : index
    %24 = vector.load %arg4[%c96, %c7] : memref<288x128xf32, #tpu.memory_space<vmem>>, vector<32x49xf32>
    %c3 = arith.constant 3 : index
    %c0_17 = arith.constant 0 : index
    %25 = vector.load %arg2[%c3, %c0_17] : memref<9x49xf32, #tpu.memory_space<vmem>>, vector<1x49xf32>
    %26 = vector.broadcast %25 : vector<1x49xf32> to vector<32x49xf32>
    %27 = arith.mulf %24, %26 : vector<32x49xf32>
    %28 = arith.addf %23, %27 : vector<32x49xf32>
    %c128 = arith.constant 128 : index
    %c8_18 = arith.constant 8 : index
    %29 = vector.load %arg4[%c128, %c8_18] : memref<288x128xf32, #tpu.memory_space<vmem>>, vector<32x49xf32>
    %c4 = arith.constant 4 : index
    %c0_19 = arith.constant 0 : index
    %30 = vector.load %arg2[%c4, %c0_19] : memref<9x49xf32, #tpu.memory_space<vmem>>, vector<1x49xf32>
    %31 = vector.broadcast %30 : vector<1x49xf32> to vector<32x49xf32>
    %32 = arith.mulf %29, %31 : vector<32x49xf32>
    %33 = arith.addf %28, %32 : vector<32x49xf32>
    %c160 = arith.constant 160 : index
    %c9 = arith.constant 9 : index
    %34 = vector.load %arg4[%c160, %c9] : memref<288x128xf32, #tpu.memory_space<vmem>>, vector<32x49xf32>
    %c5 = arith.constant 5 : index
    %c0_20 = arith.constant 0 : index
    %35 = vector.load %arg2[%c5, %c0_20] : memref<9x49xf32, #tpu.memory_space<vmem>>, vector<1x49xf32>
    %36 = vector.broadcast %35 : vector<1x49xf32> to vector<32x49xf32>
    %37 = arith.mulf %34, %36 : vector<32x49xf32>
    %38 = arith.addf %33, %37 : vector<32x49xf32>
    %c192 = arith.constant 192 : index
    %c14 = arith.constant 14 : index
    %39 = vector.load %arg4[%c192, %c14] : memref<288x128xf32, #tpu.memory_space<vmem>>, vector<32x49xf32>
    %c6 = arith.constant 6 : index
    %c0_21 = arith.constant 0 : index
    %40 = vector.load %arg2[%c6, %c0_21] : memref<9x49xf32, #tpu.memory_space<vmem>>, vector<1x49xf32>
    %41 = vector.broadcast %40 : vector<1x49xf32> to vector<32x49xf32>
    %42 = arith.mulf %39, %41 : vector<32x49xf32>
    %43 = arith.addf %38, %42 : vector<32x49xf32>
    %c224 = arith.constant 224 : index
    %c15 = arith.constant 15 : index
    %44 = vector.load %arg4[%c224, %c15] : memref<288x128xf32, #tpu.memory_space<vmem>>, vector<32x49xf32>
    %c7_22 = arith.constant 7 : index
    %c0_23 = arith.constant 0 : index
    %45 = vector.load %arg2[%c7_22, %c0_23] : memref<9x49xf32, #tpu.memory_space<vmem>>, vector<1x49xf32>
    %46 = vector.broadcast %45 : vector<1x49xf32> to vector<32x49xf32>
    %47 = arith.mulf %44, %46 : vector<32x49xf32>
    %48 = arith.addf %43, %47 : vector<32x49xf32>
    %c256 = arith.constant 256 : index
    %c16 = arith.constant 16 : index
    %49 = vector.load %arg4[%c256, %c16] : memref<288x128xf32, #tpu.memory_space<vmem>>, vector<32x49xf32>
    %c8_24 = arith.constant 8 : index
    %c0_25 = arith.constant 0 : index
    %50 = vector.load %arg2[%c8_24, %c0_25] : memref<9x49xf32, #tpu.memory_space<vmem>>, vector<1x49xf32>
    %51 = vector.broadcast %50 : vector<1x49xf32> to vector<32x49xf32>
    %52 = arith.mulf %49, %51 : vector<32x49xf32>
    %53 = arith.addf %48, %52 : vector<32x49xf32>
    %c0_26 = arith.constant 0 : index
    %c0_27 = arith.constant 0 : index
    %54 = vector.load %arg3[%c0_26, %c0_27] : memref<32x49xf32, #tpu.memory_space<vmem>>, vector<32x49xf32>
    tpu.vector_store %arg3[%c0_26, %c0_27], %53 {strides = array<i32>} : memref<32x49xf32, #tpu.memory_space<vmem>>, vector<32x49xf32>,
    return
  }
}

</mosaic_0001>

<llo_original>
// kernel: relu_conv2d.1
$region0: #{relu_conv2d.1}
  #allocation0 [shape = 'u32[]', space=smem, size = 0x4, offset = 0x4, fixed_abs, tag = 'smem constant byte address 0x4 - core index']
  #allocation1 [shape = 'u32[144,128]{1,0:T(1,128)}', space=vmem, size = 0x12000, scoped, tag = 'internal scratch']
  #allocation2 [shape = 'f32[288,128]{1,0:T(8,128)}', space=vmem, size = 0x24000, scoped, tag = 'scratch operand']
  %s0 = inlined_call_operand.vmem [shape: f32[128,49], index: 0, kind: input, shape index: {}]
  %s1 = inlined_call_operand.vmem [shape: f32[288,128], index: 1, kind: input, shape index: {}]
  %s2 = inlined_call_operand.vmem [shape: f32[9,49], index: 2, kind: input, shape index: {}]
  %s3 = inlined_call_operand.vmem [shape: f32[32,49], index: 3, kind: output, shape index: {}]
  %s4 = sld [smem:[#allocation0]]
  $region22: #{relu_conv2d.1} parent=0
    _
  %s6 = ssub.s32 1, %s4
  %s7 = scalar_select 0, %s6, %s4
  // Predicated region
  $region2: #{relu_conv2d.1} parent=0 // pred_check
    _
  $region3: #{relu_conv2d.1} parent=0 // pred_check_branch
    %9 = sbr.rel (0) target = $region5
  $region4: #{relu_conv2d.1} parent=0 // pred_region
    _
  $region5: #{relu_conv2d.1} parent=0 // pred_fallthru
    _
  // Predicated region
  $region6: #{relu_conv2d.1} parent=0 // pred_check
    _
  $region7: #{relu_conv2d.1} parent=0 // pred_check_branch
    %11 = sbr.rel (0) target = $region9
  $region8: #{relu_conv2d.1} parent=0 // pred_region
    _
  $region9: #{relu_conv2d.1} parent=0 // pred_fallthru
    _
  // Predicated region
  $region10: #{relu_conv2d.1} parent=0 // pred_check
    _
  $region11: #{relu_conv2d.1} parent=0 // pred_check_branch
    %13 = sbr.rel (0) target = $region13
  $region12: #{relu_conv2d.1} parent=0 // pred_region
    _
  $region13: #{relu_conv2d.1} parent=0 // pred_fallthru
    _
  %v14 = vld [vmem:[%s0] sm:$0xff]
  %v15 = vld [vmem:[%s0 + $0x8] sm:$0xff]
  %v16 = vld [vmem:[%s0 + $0x10] sm:$0xff]
  %v17 = vld [vmem:[%s0 + $0x18] sm:$0xff]
  %v18 = vld [vmem:[%s0 + $0x20] sm:$0xff]
  %v19 = vld [vmem:[%s0 + $0x28] sm:$0xff]
  %v20 = vld [vmem:[%s0 + $0x30] sm:$0xff]
  %v21 = vld [vmem:[%s0 + $0x38] sm:$0xff]
  %v22 = vld [vmem:[%s0 + $0x40] sm:$0xff]
  %v23 = vld [vmem:[%s0 + $0x48] sm:$0xff]
  %v24 = vld [vmem:[%s0 + $0x50] sm:$0xff]
  %v25 = vld [vmem:[%s0 + $0x58] sm:$0xff]
  %v26 = vld [vmem:[%s0 + $0x60] sm:$0xff]
  %v27 = vld [vmem:[%s0 + $0x68] sm:$0xff]
  %v28 = vld [vmem:[%s0 + $0x70] sm:$0xff]
  %v29 = vld [vmem:[%s0 + $0x78] sm:$0xff]
  %v30 = vmax.f32 %v14, 0.0
  %v31 = vmax.f32 %v15, 0.0
  %v32 = vmax.f32 %v16, 0.0
  %v33 = vmax.f32 %v17, 0.0
  %v34 = vmax.f32 %v18, 0.0
  %v35 = vmax.f32 %v19, 0.0
  %v36 = vmax.f32 %v20, 0.0
  %v37 = vmax.f32 %v21, 0.0
  %v38 = vmax.f32 %v22, 0.0
  %v39 = vmax.f32 %v23, 0.0
  %v40 = vmax.f32 %v24, 0.0
  %v41 = vmax.f32 %v25, 0.0
  %v42 = vmax.f32 %v26, 0.0
  %v43 = vmax.f32 %v27, 0.0
  %v44 = vmax.f32 %v28, 0.0
  %v45 = vmax.f32 %v29, 0.0
  %v46 = vld [vmem:[%s1] sm:$0xff]
  %v47 = vld [vmem:[%s1 + $0x8] sm:$0xff]
  %v48 = vld [vmem:[%s1 + $0x10] sm:$0xff]
  %v49 = vld [vmem:[%s1 + $0x18] sm:$0xff]
  %v50 = vld [vmem:[%s1 + $0x20] sm:$0xff]
  %v51 = vld [vmem:[%s1 + $0x28] sm:$0xff]
  %v52 = vld [vmem:[%s1 + $0x30] sm:$0xff]
  %v53 = vld [vmem:[%s1 + $0x38] sm:$0xff]
  %v54 = vld [vmem:[%s1 + $0x40] sm:$0xff]
  %v55 = vld [vmem:[%s1 + $0x48] sm:$0xff]
  %v56 = vld [vmem:[%s1 + $0x50] sm:$0xff]
  %v57 = vld [vmem:[%s1 + $0x58] sm:$0xff]
  %v58 = vld [vmem:[%s1 + $0x60] sm:$0xff]
  %v59 = vld [vmem:[%s1 + $0x68] sm:$0xff]
  %v60 = vld [vmem:[%s1 + $0x70] sm:$0xff]
  %v61 = vld [vmem:[%s1 + $0x78] sm:$0xff]
  %v62 = vld [vmem:[%s1 + $0x80] sm:$0xff]
  %v63 = vld [vmem:[%s1 + $0x88] sm:$0xff]
  %v64 = vld [vmem:[%s1 + $0x90] sm:$0xff]
  %v65 = vld [vmem:[%s1 + $0x98] sm:$0xff]
  %v66 = vld [vmem:[%s1 + $0xa0] sm:$0xff]
  %v67 = vld [vmem:[%s1 + $0xa8] sm:$0xff]
  %v68 = vld [vmem:[%s1 + $0xb0] sm:$0xff]
  %v69 = vld [vmem:[%s1 + $0xb8] sm:$0xff]
  %v70 = vld [vmem:[%s1 + $0xc0] sm:$0xff]
  %v71 = vld [vmem:[%s1 + $0xc8] sm:$0xff]
  %v72 = vld [vmem:[%s1 + $0xd0] sm:$0xff]
  %v73 = vld [vmem:[%s1 + $0xd8] sm:$0xff]
  %v74 = vld [vmem:[%s1 + $0xe0] sm:$0xff]
  %v75 = vld [vmem:[%s1 + $0xe8] sm:$0xff]
  %v76 = vld [vmem:[%s1 + $0xf0] sm:$0xff]
  %v77 = vld [vmem:[%s1 + $0xf8] sm:$0xff]
  %v78 = vld [vmem:[%s1 + $0x100] sm:$0xff]
  %v79 = vld [vmem:[%s1 + $0x108] sm:$0xff]
  %v80 = vld [vmem:[%s1 + $0x110] sm:$0xff]
  %v81 = vld [vmem:[%s1 + $0x118] sm:$0xff]
  %82 = vmatprep.subr.mxu0 0.0
  %83 = vmatpush1.msra.mxu0 %v30
  %84 = vmatprep.subr.mxu0 0.0
  %85 = vmatpush1.msra.mxu0 %v31
  %86 = vmatprep.subr.mxu0 0.0
  %87 = vmatpush1.msra.mxu0 %v32
  %88 = vmatprep.subr.mxu0 0.0
  %89 = vmatpush1.msra.mxu0 %v33
  %90 = vmatprep.subr.mxu0 0.0
  %91 = vmatpush1.msra.mxu0 %v34
  %92 = vmatprep.subr.mxu0 0.0
  %93 = vmatpush1.msra.mxu0 %v35
  %94 = vmatprep.subr.mxu0 0.0
  %95 = vmatpush1.msra.mxu0 %v36
  %96 = vmatprep.subr.mxu0 0.0
  %97 = vmatpush1.msra.mxu0 %v37
  %98 = vmatprep.subr.mxu0 0.0
  %99 = vmatpush1.msra.mxu0 %v38
  %100 = vmatprep.subr.mxu0 0.0
  %101 = vmatpush1.msra.mxu0 %v39
  %102 = vmatprep.subr.mxu0 0.0
  %103 = vmatpush1.msra.mxu0 %v40
  %104 = vmatprep.subr.mxu0 0.0
  %105 = vmatpush1.msra.mxu0 %v41
  %106 = vmatprep.subr.mxu0 0.0
  %107 = vmatpush1.msra.mxu0 %v42
  %108 = vmatprep.subr.mxu0 0.0
  %109 = vmatpush1.msra.mxu0 %v43
  %110 = vmatprep.subr.mxu0 0.0
  %111 = vmatpush1.msra.mxu0 %v44
  %112 = vmatprep.subr.mxu0 0.0
  %113 = vmatpush1.msra.mxu0 %v45
  %114 = vmatprep.subr.mxu0 0.0
  %115 = vmatpush1.msra.mxu0 0.0
  %116 = vmatprep.subr.mxu0 0.0
  %117 = vmatpush1.msra.mxu0 0.0
  %118 = vmatprep.subr.mxu0 0.0
  %119 = vmatpush1.msra.mxu0 0.0
  %120 = vmatprep.subr.mxu0 0.0
  %121 = vmatpush1.msra.mxu0 0.0
  %122 = vmatprep.subr.mxu0 0.0
  %123 = vmatpush1.msra.mxu0 0.0
  %124 = vmatprep.subr.mxu0 0.0
  %125 = vmatpush1.msra.mxu0 0.0
  %126 = vmatprep.subr.mxu0 0.0
  %127 = vmatpush1.msra.mxu0 0.0
  %128 = vmatprep.subr.mxu0 0.0
  %129 = vmatpush1.msra.mxu0 0.0
  %130 = vmatprep.subr.mxu0 0.0
  %131 = vmatpush1.msra.mxu0 0.0
  %132 = vmatprep.subr.mxu0 0.0
  %133 = vmatpush1.msra.mxu0 0.0
  %134 = vmatprep.subr.mxu0 0.0
  %135 = vmatpush1.msra.mxu0 0.0
  %136 = vmatprep.subr.mxu0 0.0
  %137 = vmatpush1.msra.mxu0 0.0
  %138 = vmatprep.subr.mxu0 0.0
  %139 = vmatpush1.msra.mxu0 0.0
  %140 = vmatprep.subr.mxu0 0.0
  %141 = vmatpush1.msra.mxu0 0.0
  %142 = vmatprep.subr.mxu0 0.0
  %143 = vmatpush1.msra.mxu0 0.0
  %144 = vmatprep.subr.mxu0 0.0
  %145 = vmatpush1.msra.mxu0 0.0
  %146 = vmatprep.mubr.f32.mxu0 0.0
  %147 = vmatmul.mubr.f32.gmra.mrb[0].mxu0 %v46
  %v148 = vpop.f32.mrb[0].mxu0
  %v149 = vadd.f32 0.0, %v148
  %v150 = vpop.f32.mrb[0].mxu0
  %151 = vmatprep.mubr.f32.mxu0 0.0
  %152 = vmatmul.mubr.f32.gmra.mrb[0].mxu0 %v47
  %v153 = vpop.f32.mrb[0].mxu0
  %v154 = vadd.f32 0.0, %v153
  %v155 = vpop.f32.mrb[0].mxu0
  %156 = vmatprep.mubr.f32.mxu0 0.0
  %157 = vmatmul.mubr.f32.gmra.mrb[0].mxu0 %v48
  %v158 = vpop.f32.mrb[0].mxu0
  %v159 = vadd.f32 0.0, %v158
  %v160 = vpop.f32.mrb[0].mxu0
  %161 = vmatprep.mubr.f32.mxu0 0.0
  %162 = vmatmul.mubr.f32.gmra.mrb[0].mxu0 %v49
  %v163 = vpop.f32.mrb[0].mxu0
  %v164 = vadd.f32 0.0, %v163
  %v165 = vpop.f32.mrb[0].mxu0
  %166 = vmatprep.mubr.f32.mxu0 0.0
  %167 = vmatmul.mubr.f32.gmra.mrb[0].mxu0 %v50
  %v168 = vpop.f32.mrb[0].mxu0
  %v169 = vadd.f32 0.0, %v168
  %v170 = vpop.f32.mrb[0].mxu0
  %171 = vmatprep.mubr.f32.mxu0 0.0
  %172 = vmatmul.mubr.f32.gmra.mrb[0].mxu0 %v51
  %v173 = vpop.f32.mrb[0].mxu0
  %v174 = vadd.f32 0.0, %v173
  %v175 = vpop.f32.mrb[0].mxu0
  %176 = vmatprep.mubr.f32.mxu0 0.0
  %177 = vmatmul.mubr.f32.gmra.mrb[0].mxu0 %v52
  %v178 = vpop.f32.mrb[0].mxu0
  %v179 = vadd.f32 0.0, %v178
  %v180 = vpop.f32.mrb[0].mxu0
  %181 = vmatprep.mubr.f32.mxu0 0.0
  %182 = vmatmul.mubr.f32.gmra.mrb[0].mxu0 %v53
  %v183 = vpop.f32.mrb[0].mxu0
  %v184 = vadd.f32 0.0, %v183
  %v185 = vpop.f32.mrb[0].mxu0
  %186 = vmatprep.mubr.f32.mxu0 0.0
  %187 = vmatmul.mubr.f32.gmra.mrb[0].mxu0 %v54
  %v188 = vpop.f32.mrb[0].mxu0
  %v189 = vadd.f32 0.0, %v188
  %v190 = vpop.f32.mrb[0].mxu0
  %191 = vmatprep.mubr.f32.mxu0 0.0
  %192 = vmatmul.mubr.f32.gmra.mrb[0].mxu0 %v55
  %v193 = vpop.f32.mrb[0].mxu0
  %v194 = vadd.f32 0.0, %v193
  %v195 = vpop.f32.mrb[0].mxu0
  %196 = vmatprep.mubr.f32.mxu0 0.0
  %197 = vmatmul.mubr.f32.gmra.mrb[0].mxu0 %v56
  %v198 = vpop.f32.mrb[0].mxu0
  %v199 = vadd.f32 0.0, %v198
  %v200 = vpop.f32.mrb[0].mxu0
  %201 = vmatprep.mubr.f32.mxu0 0.0
  %202 = vmatmul.mubr.f32.gmra.mrb[0].mxu0 %v57
  %v203 = vpop.f32.mrb[0].mxu0
  %v204 = vadd.f32 0.0, %v203
  %v205 = vpop.f32.mrb[0].mxu0
  %206 = vmatprep.mubr.f32.mxu0 0.0
  %207 = vmatmul.mubr.f32.gmra.mrb[0].mxu0 %v58
  %v208 = vpop.f32.mrb[0].mxu0
  %v209 = vadd.f32 0.0, %v208
  %v210 = vpop.f32.mrb[0].mxu0
  %211 = vmatprep.mubr.f32.mxu0 0.0
  %212 = vmatmul.mubr.f32.gmra.mrb[0].mxu0 %v59
  %v213 = vpop.f32.mrb[0].mxu0
  %v214 = vadd.f32 0.0, %v213
  %v215 = vpop.f32.mrb[0].mxu0
  %216 = vmatprep.mubr.f32.mxu0 0.0
  %217 = vmatmul.mubr.f32.gmra.mrb[0].mxu0 %v60
  %v218 = vpop.f32.mrb[0].mxu0
  %v219 = vadd.f32 0.0, %v218
  %v220 = vpop.f32.mrb[0].mxu0
  %221 = vmatprep.mubr.f32.mxu0 0.0
  %222 = vmatmul.mubr.f32.gmra.mrb[0].mxu0 %v61
  %v223 = vpop.f32.mrb[0].mxu0
  %v224 = vadd.f32 0.0, %v223
  %v225 = vpop.f32.mrb[0].mxu0
  %226 = vmatprep.mubr.f32.mxu0 0.0
  %227 = vmatmul.mubr.f32.gmra.mrb[0].mxu0 %v62
  %v228 = vpop.f32.mrb[0].mxu0
  %v229 = vadd.f32 0.0, %v228
  %v230 = vpop.f32.mrb[0].mxu0
  %231 = vmatprep.mubr.f32.mxu0 0.0
  %232 = vmatmul.mubr.f32.gmra.mrb[0].mxu0 %v63
  %v233 = vpop.f32.mrb[0].mxu0
  %v234 = vadd.f32 0.0, %v233
  %v235 = vpop.f32.mrb[0].mxu0
  %236 = vmatprep.mubr.f32.mxu0 0.0
  %237 = vmatmul.mubr.f32.gmra.mrb[0].mxu0 %v64
  %v238 = vpop.f32.mrb[0].mxu0
  %v239 = vadd.f32 0.0, %v238
  %v240 = vpop.f32.mrb[0].mxu0
  %241 = vmatprep.mubr.f32.mxu0 0.0
  %242 = vmatmul.mubr.f32.gmra.mrb[0].mxu0 %v65
  %v243 = vpop.f32.mrb[0].mxu0
  %v244 = vadd.f32 0.0, %v243
  %v245 = vpop.f32.mrb[0].mxu0
  %246 = vmatprep.mubr.f32.mxu0 0.0
  %247 = vmatmul.mubr.f32.gmra.mrb[0].mxu0 %v66
  %v248 = vpop.f32.mrb[0].mxu0
  %v249 = vadd.f32 0.0, %v248
  %v250 = vpop.f32.mrb[0].mxu0
  %251 = vmatprep.mubr.f32.mxu0 0.0
  %252 = vmatmul.mubr.f32.gmra.mrb[0].mxu0 %v67
  %v253 = vpop.f32.mrb[0].mxu0
  %v254 = vadd.f32 0.0, %v253
  %v255 = vpop.f32.mrb[0].mxu0
  %256 = vmatprep.mubr.f32.mxu0 0.0
  %257 = vmatmul.mubr.f32.gmra.mrb[0].mxu0 %v68
  %v258 = vpop.f32.mrb[0].mxu0
  %v259 = vadd.f32 0.0, %v258
  %v260 = vpop.f32.mrb[0].mxu0
  %261 = vmatprep.mubr.f32.mxu0 0.0
  %262 = vmatmul.mubr.f32.gmra.mrb[0].mxu0 %v69
  %v263 = vpop.f32.mrb[0].mxu0
  %v264 = vadd.f32 0.0, %v263
  %v265 = vpop.f32.mrb[0].mxu0
  %266 = vmatprep.mubr.f32.mxu0 0.0
  %267 = vmatmul.mubr.f32.gmra.mrb[0].mxu0 %v70
  %v268 = vpop.f32.mrb[0].mxu0
  %v269 = vadd.f32 0.0, %v268
  %v270 = vpop.f32.mrb[0].mxu0
  %271 = vmatprep.mubr.f32.mxu0 0.0
  %272 = vmatmul.mubr.f32.gmra.mrb[0].mxu0 %v71
  %v273 = vpop.f32.mrb[0].mxu0
  %v274 = vadd.f32 0.0, %v273
  %v275 = vpop.f32.mrb[0].mxu0
  %276 = vmatprep.mubr.f32.mxu0 0.0
  %277 = vmatmul.mubr.f32.gmra.mrb[0].mxu0 %v72
  %v278 = vpop.f32.mrb[0].mxu0
  %v279 = vadd.f32 0.0, %v278
  %v280 = vpop.f32.mrb[0].mxu0
  %281 = vmatprep.mubr.f32.mxu0 0.0
  %282 = vmatmul.mubr.f32.gmra.mrb[0].mxu0 %v73
  %v283 = vpop.f32.mrb[0].mxu0
  %v284 = vadd.f32 0.0, %v283
  %v285 = vpop.f32.mrb[0].mxu0
  %286 = vmatprep.mubr.f32.mxu0 0.0
  %287 = vmatmul.mubr.f32.gmra.mrb[0].mxu0 %v74
  %v288 = vpop.f32.mrb[0].mxu0
  %v289 = vadd.f32 0.0, %v288
  %v290 = vpop.f32.mrb[0].mxu0
  %291 = vmatprep.mubr.f32.mxu0 0.0
  %292 = vmatmul.mubr.f32.gmra.mrb[0].mxu0 %v75
  %v293 = vpop.f32.mrb[0].mxu0
  %v294 = vadd.f32 0.0, %v293
  %v295 = vpop.f32.mrb[0].mxu0
  %296 = vmatprep.mubr.f32.mxu0 0.0
  %297 = vmatmul.mubr.f32.gmra.mrb[0].mxu0 %v76
  %v298 = vpop.f32.mrb[0].mxu0
  %v299 = vadd.f32 0.0, %v298
  %v300 = vpop.f32.mrb[0].mxu0
  %301 = vmatprep.mubr.f32.mxu0 0.0
  %302 = vmatmul.mubr.f32.gmra.mrb[0].mxu0 %v77
  %v303 = vpop.f32.mrb[0].mxu0
  %v304 = vadd.f32 0.0, %v303
  %v305 = vpop.f32.mrb[0].mxu0
  %306 = vmatprep.mubr.f32.mxu0 0.0
  %307 = vmatmul.mubr.f32.gmra.mrb[0].mxu0 %v78
  %v308 = vpop.f32.mrb[0].mxu0
  %v309 = vadd.f32 0.0, %v308
  %v310 = vpop.f32.mrb[0].mxu0
  %311 = vmatprep.mubr.f32.mxu0 0.0
  %312 = vmatmul.mubr.f32.gmra.mrb[0].mxu0 %v79
  %v313 = vpop.f32.mrb[0].mxu0
  %v314 = vadd.f32 0.0, %v313
  %v315 = vpop.f32.mrb[0].mxu0
  %316 = vmatprep.mubr.f32.mxu0 0.0
  %317 = vmatmul.mubr.f32.gmra.mrb[0].mxu0 %v80
  %v318 = vpop.f32.mrb[0].mxu0
  %v319 = vadd.f32 0.0, %v318
  %v320 = vpop.f32.mrb[0].mxu0
  %321 = vmatprep.mubr.f32.mxu0 0.0
  %322 = vmatmul.mubr.f32.gmra.mrb[0].mxu0 %v81
  %v323 = vpop.f32.mrb[0].mxu0
  %v324 = vadd.f32 0.0, %v323
  %v325 = vpop.f32.mrb[0].mxu0
  %326 = vdwg.mxu0
  %327 = vst [vmem:[#allocation2] sm:$0xff] 0.0
  %328 = vst [vmem:[#allocation2 + $0x8] sm:$0xff] 0.0
  %329 = vst [vmem:[#allocation2 + $0x10] sm:$0xff] 0.0
  %330 = vst [vmem:[#allocation2 + $0x18] sm:$0xff] 0.0
  %331 = vst [vmem:[#allocation2 + $0x20] sm:$0xff] 0.0
  %332 = vst [vmem:[#allocation2 + $0x28] sm:$0xff] 0.0
  %333 = vst [vmem:[#allocation2 + $0x30] sm:$0xff] 0.0
  %334 = vst [vmem:[#allocation2 + $0x38] sm:$0xff] 0.0
  %335 = vst [vmem:[#allocation2 + $0x40] sm:$0xff] 0.0
  %336 = vst [vmem:[#allocation2 + $0x48] sm:$0xff] 0.0
  %337 = vst [vmem:[#allocation2 + $0x50] sm:$0xff] 0.0
  %338 = vst [vmem:[#allocation2 + $0x58] sm:$0xff] 0.0
  %339 = vst [vmem:[#allocation2 + $0x60] sm:$0xff] 0.0
  %340 = vst [vmem:[#allocation2 + $0x68] sm:$0xff] 0.0
  %341 = vst [vmem:[#allocation2 + $0x70] sm:$0xff] 0.0
  %342 = vst [vmem:[#allocation2 + $0x78] sm:$0xff] 0.0
  %343 = vst [vmem:[#allocation2 + $0x80] sm:$0xff] 0.0
  %344 = vst [vmem:[#allocation2 + $0x88] sm:$0xff] 0.0
  %345 = vst [vmem:[#allocation2 + $0x90] sm:$0xff] 0.0
  %346 = vst [vmem:[#allocation2 + $0x98] sm:$0xff] 0.0
  %347 = vst [vmem:[#allocation2 + $0xa0] sm:$0xff] 0.0
  %348 = vst [vmem:[#allocation2 + $0xa8] sm:$0xff] 0.0
  %349 = vst [vmem:[#allocation2 + $0xb0] sm:$0xff] 0.0
  %350 = vst [vmem:[#allocation2 + $0xb8] sm:$0xff] 0.0
  %351 = vst [vmem:[#allocation2 + $0xc0] sm:$0xff] 0.0
  %352 = vst [vmem:[#allocation2 + $0xc8] sm:$0xff] 0.0
  %353 = vst [vmem:[#allocation2 + $0xd0] sm:$0xff] 0.0
  %354 = vst [vmem:[#allocation2 + $0xd8] sm:$0xff] 0.0
  %355 = vst [vmem:[#allocation2 + $0xe0] sm:$0xff] 0.0
  %356 = vst [vmem:[#allocation2 + $0xe8] sm:$0xff] 0.0
  %357 = vst [vmem:[#allocation2 + $0xf0] sm:$0xff] 0.0
  %358 = vst [vmem:[#allocation2 + $0xf8] sm:$0xff] 0.0
  %359 = vst [vmem:[#allocation2 + $0x100] sm:$0xff] 0.0
  %360 = vst [vmem:[#allocation2 + $0x108] sm:$0xff] 0.0
  %361 = vst [vmem:[#allocation2 + $0x110] sm:$0xff] 0.0
  %362 = vst [vmem:[#allocation2 + $0x118] sm:$0xff] 0.0
  %399 = vrot.lane.b32.xlu0 %v149, 8
  %v400 = vpop.permute.xlu0 %399
  %401 = vrot.lane.b32.xlu0 %v154, 8
  %v402 = vpop.permute.xlu0 %401
  %403 = vrot.lane.b32.xlu0 %v159, 8
  %v404 = vpop.permute.xlu0 %403
  %405 = vrot.lane.b32.xlu0 %v164, 8
  %v406 = vpop.permute.xlu0 %405
  %407 = vrot.lane.b32.xlu0 %v169, 8
  %v408 = vpop.permute.xlu0 %407
  %409 = vrot.lane.b32.xlu0 %v174, 8
  %v410 = vpop.permute.xlu0 %409
  %411 = vrot.lane.b32.xlu0 %v179, 8
  %v412 = vpop.permute.xlu0 %411
  %413 = vrot.lane.b32.xlu0 %v184, 8
  %v414 = vpop.permute.xlu0 %413
  %415 = vrot.lane.b32.xlu0 %v189, 8
  %v416 = vpop.permute.xlu0 %415
  %417 = vrot.lane.b32.xlu0 %v194, 8
  %v418 = vpop.permute.xlu0 %417
  %419 = vrot.lane.b32.xlu0 %v199, 8
  %v420 = vpop.permute.xlu0 %419
  %421 = vrot.lane.b32.xlu0 %v204, 8
  %v422 = vpop.permute.xlu0 %421
  %423 = vrot.lane.b32.xlu0 %v209, 8
  %v424 = vpop.permute.xlu0 %423
  %425 = vrot.lane.b32.xlu0 %v214, 8
  %v426 = vpop.permute.xlu0 %425
  %427 = vrot.lane.b32.xlu0 %v219, 8
  %v428 = vpop.permute.xlu0 %427
  %429 = vrot.lane.b32.xlu0 %v224, 8
  %v430 = vpop.permute.xlu0 %429
  %431 = vrot.lane.b32.xlu0 %v229, 8
  %v432 = vpop.permute.xlu0 %431
  %433 = vrot.lane.b32.xlu0 %v234, 8
  %v434 = vpop.permute.xlu0 %433
  %435 = vrot.lane.b32.xlu0 %v239, 8
  %v436 = vpop.permute.xlu0 %435
  %437 = vrot.lane.b32.xlu0 %v244, 8
  %v438 = vpop.permute.xlu0 %437
  %439 = vrot.lane.b32.xlu0 %v249, 8
  %v440 = vpop.permute.xlu0 %439
  %441 = vrot.lane.b32.xlu0 %v254, 8
  %v442 = vpop.permute.xlu0 %441
  %443 = vrot.lane.b32.xlu0 %v259, 8
  %v444 = vpop.permute.xlu0 %443
  %445 = vrot.lane.b32.xlu0 %v264, 8
  %v446 = vpop.permute.xlu0 %445
  %447 = vrot.lane.b32.xlu0 %v269, 8
  %v448 = vpop.permute.xlu0 %447
  %449 = vrot.lane.b32.xlu0 %v274, 8
  %v450 = vpop.permute.xlu0 %449
  %451 = vrot.lane.b32.xlu0 %v279, 8
  %v452 = vpop.permute.xlu0 %451
  %453 = vrot.lane.b32.xlu0 %v284, 8
  %v454 = vpop.permute.xlu0 %453
  %455 = vrot.lane.b32.xlu0 %v289, 8
  %v456 = vpop.permute.xlu0 %455
  %457 = vrot.lane.b32.xlu0 %v294, 8
  %v458 = vpop.permute.xlu0 %457
  %459 = vrot.lane.b32.xlu0 %v299, 8
  %v460 = vpop.permute.xlu0 %459
  %461 = vrot.lane.b32.xlu0 %v304, 8
  %v462 = vpop.permute.xlu0 %461
  %463 = vrot.lane.b32.xlu0 %v309, 8
  %v464 = vpop.permute.xlu0 %463
  %465 = vrot.lane.b32.xlu0 %v314, 8
  %v466 = vpop.permute.xlu0 %465
  %467 = vrot.lane.b32.xlu0 %v319, 8
  %v468 = vpop.permute.xlu0 %467
  %469 = vrot.lane.b32.xlu0 %v324, 8
  %v470 = vpop.permute.xlu0 %469
  %vm507 = vcmask 465984
  %508 = vst.msk [vmem:[#allocation2] sm:$0xff] %vm507, %v400
  %509 = vst.msk [vmem:[#allocation2 + $0x8] sm:$0xff] %vm507, %v402
  %510 = vst.msk [vmem:[#allocation2 + $0x10] sm:$0xff] %vm507, %v404
  %511 = vst.msk [vmem:[#allocation2 + $0x18] sm:$0xff] %vm507, %v406
  %512 = vst.msk [vmem:[#allocation2 + $0x20] sm:$0xff] %vm507, %v408
  %513 = vst.msk [vmem:[#allocation2 + $0x28] sm:$0xff] %vm507, %v410
  %514 = vst.msk [vmem:[#allocation2 + $0x30] sm:$0xff] %vm507, %v412
  %515 = vst.msk [vmem:[#allocation2 + $0x38] sm:$0xff] %vm507, %v414
  %516 = vst.msk [vmem:[#allocation2 + $0x40] sm:$0xff] %vm507, %v416
  %517 = vst.msk [vmem:[#allocation2 + $0x48] sm:$0xff] %vm507, %v418
  %518 = vst.msk [vmem:[#allocation2 + $0x50] sm:$0xff] %vm507, %v420
  %519 = vst.msk [vmem:[#allocation2 + $0x58] sm:$0xff] %vm507, %v422
  %520 = vst.msk [vmem:[#allocation2 + $0x60] sm:$0xff] %vm507, %v424
  %521 = vst.msk [vmem:[#allocation2 + $0x68] sm:$0xff] %vm507, %v426
  %522 = vst.msk [vmem:[#allocation2 + $0x70] sm:$0xff] %vm507, %v428
  %523 = vst.msk [vmem:[#allocation2 + $0x78] sm:$0xff] %vm507, %v430
  %524 = vst.msk [vmem:[#allocation2 + $0x80] sm:$0xff] %vm507, %v432
  %525 = vst.msk [vmem:[#allocation2 + $0x88] sm:$0xff] %vm507, %v434
  %526 = vst.msk [vmem:[#allocation2 + $0x90] sm:$0xff] %vm507, %v436
  %527 = vst.msk [vmem:[#allocation2 + $0x98] sm:$0xff] %vm507, %v438
  %528 = vst.msk [vmem:[#allocation2 + $0xa0] sm:$0xff] %vm507, %v440
  %529 = vst.msk [vmem:[#allocation2 + $0xa8] sm:$0xff] %vm507, %v442
  %530 = vst.msk [vmem:[#allocation2 + $0xb0] sm:$0xff] %vm507, %v444
  %531 = vst.msk [vmem:[#allocation2 + $0xb8] sm:$0xff] %vm507, %v446
  %532 = vst.msk [vmem:[#allocation2 + $0xc0] sm:$0xff] %vm507, %v448
  %533 = vst.msk [vmem:[#allocation2 + $0xc8] sm:$0xff] %vm507, %v450
  %534 = vst.msk [vmem:[#allocation2 + $0xd0] sm:$0xff] %vm507, %v452
  %535 = vst.msk [vmem:[#allocation2 + $0xd8] sm:$0xff] %vm507, %v454
  %536 = vst.msk [vmem:[#allocation2 + $0xe0] sm:$0xff] %vm507, %v456
  %537 = vst.msk [vmem:[#allocation2 + $0xe8] sm:$0xff] %vm507, %v458
  %538 = vst.msk [vmem:[#allocation2 + $0xf0] sm:$0xff] %vm507, %v460
  %539 = vst.msk [vmem:[#allocation2 + $0xf8] sm:$0xff] %vm507, %v462
  %540 = vst.msk [vmem:[#allocation2 + $0x100] sm:$0xff] %vm507, %v464
  %541 = vst.msk [vmem:[#allocation2 + $0x108] sm:$0xff] %vm507, %v466
  %542 = vst.msk [vmem:[#allocation2 + $0x110] sm:$0xff] %vm507, %v468
  %543 = vst.msk [vmem:[#allocation2 + $0x118] sm:$0xff] %vm507, %v470
  %v544 = vld [vmem:[#allocation2] sm:$0xff]
  %v545 = vld [vmem:[#allocation2 + $0x8] sm:$0xff]
  %v546 = vld [vmem:[#allocation2 + $0x10] sm:$0xff]
  %v547 = vld [vmem:[#allocation2 + $0x18] sm:$0xff]
  %v548 = vld [vmem:[%s2] sm:$0x1]
  %v549 = vlaneseq
  %v550 = vshrl.u32 %v549, 7
  %v551 = vsub.s32 0, %v550
  %v552 = vrot.slane %v548, %v551
  %v553 = vmul.f32 %v544, %v552
  %v554 = vmul.f32 %v545, %v552
  %v555 = vmul.f32 %v546, %v552
  %v556 = vmul.f32 %v547, %v552
  %v557 = vadd.f32 %v553, 0.0
  %v558 = vadd.f32 %v554, 0.0
  %v559 = vadd.f32 %v555, 0.0
  %v560 = vadd.f32 %v556, 0.0
  %v561 = vld [vmem:[#allocation2 + $0x20] sm:$0xff]
  %v562 = vld [vmem:[#allocation2 + $0x28] sm:$0xff]
  %v563 = vld [vmem:[#allocation2 + $0x30] sm:$0xff]
  %v564 = vld [vmem:[#allocation2 + $0x38] sm:$0xff]
  %v565 = vld [vmem:[%s2 + $0x1] sm:$0x1]
  %v566 = vlaneseq
  %v567 = vshrl.u32 %v566, 7
  %v568 = vsub.s32 0, %v567
  %v569 = vrot.slane %v565, %v568
  %571 = vrot.lane.b32.xlu0 %v569, 1
  %v572 = vpop.permute.xlu0 %571
  %v574 = vmul.f32 %v561, %v572
  %v575 = vmul.f32 %v562, %v572
  %v576 = vmul.f32 %v563, %v572
  %v577 = vmul.f32 %v564, %v572
  %582 = vrot.lane.b32.xlu0 %v574, 127
  %v583 = vpop.permute.xlu0 %582
  %584 = vrot.lane.b32.xlu0 %v575, 127
  %v585 = vpop.permute.xlu0 %584
  %586 = vrot.lane.b32.xlu0 %v576, 127
  %v587 = vpop.permute.xlu0 %586
  %588 = vrot.lane.b32.xlu0 %v577, 127
  %v589 = vpop.permute.xlu0 %588
  %v594 = vadd.f32 %v557, %v583
  %v595 = vadd.f32 %v558, %v585
  %v596 = vadd.f32 %v559, %v587
  %v597 = vadd.f32 %v560, %v589
  %v598 = vld [vmem:[#allocation2 + $0x40] sm:$0xff]
  %v599 = vld [vmem:[#allocation2 + $0x48] sm:$0xff]
  %v600 = vld [vmem:[#allocation2 + $0x50] sm:$0xff]
  %v601 = vld [vmem:[#allocation2 + $0x58] sm:$0xff]
  %v602 = vld [vmem:[%s2 + $0x2] sm:$0x1]
  %v603 = vlaneseq
  %v604 = vshrl.u32 %v603, 7
  %v605 = vsub.s32 0, %v604
  %v606 = vrot.slane %v602, %v605
  %608 = vrot.lane.b32.xlu0 %v606, 2
  %v609 = vpop.permute.xlu0 %608
  %v611 = vmul.f32 %v598, %v609
  %v612 = vmul.f32 %v599, %v609
  %v613 = vmul.f32 %v600, %v609
  %v614 = vmul.f32 %v601, %v609
  %619 = vrot.lane.b32.xlu0 %v611, 126
  %v620 = vpop.permute.xlu0 %619
  %621 = vrot.lane.b32.xlu0 %v612, 126
  %v622 = vpop.permute.xlu0 %621
  %623 = vrot.lane.b32.xlu0 %v613, 126
  %v624 = vpop.permute.xlu0 %623
  %625 = vrot.lane.b32.xlu0 %v614, 126
  %v626 = vpop.permute.xlu0 %625
  %v631 = vadd.f32 %v594, %v620
  %v632 = vadd.f32 %v595, %v622
  %v633 = vadd.f32 %v596, %v624
  %v634 = vadd.f32 %v597, %v626
  %v635 = vld [vmem:[#allocation2 + $0x60] sm:$0xff]
  %v636 = vld [vmem:[#allocation2 + $0x68] sm:$0xff]
  %v637 = vld [vmem:[#allocation2 + $0x70] sm:$0xff]
  %v638 = vld [vmem:[#allocation2 + $0x78] sm:$0xff]
  %v639 = vld [vmem:[%s2 + $0x3] sm:$0x1]
  %v640 = vlaneseq
  %v641 = vshrl.u32 %v640, 7
  %v642 = vsub.s32 0, %v641
  %v643 = vrot.slane %v639, %v642
  %645 = vrot.lane.b32.xlu0 %v643, 7
  %v646 = vpop.permute.xlu0 %645
  %v648 = vmul.f32 %v635, %v646
  %v649 = vmul.f32 %v636, %v646
  %v650 = vmul.f32 %v637, %v646
  %v651 = vmul.f32 %v638, %v646
  %656 = vrot.lane.b32.xlu0 %v648, 121
  %v657 = vpop.permute.xlu0 %656
  %658 = vrot.lane.b32.xlu0 %v649, 121
  %v659 = vpop.permute.xlu0 %658
  %660 = vrot.lane.b32.xlu0 %v650, 121
  %v661 = vpop.permute.xlu0 %660
  %662 = vrot.lane.b32.xlu0 %v651, 121
  %v663 = vpop.permute.xlu0 %662
  %v668 = vadd.f32 %v631, %v657
  %v669 = vadd.f32 %v632, %v659
  %v670 = vadd.f32 %v633, %v661
  %v671 = vadd.f32 %v634, %v663
  %v672 = vld [vmem:[#allocation2 + $0x80] sm:$0xff]
  %v673 = vld [vmem:[#allocation2 + $0x88] sm:$0xff]
  %v674 = vld [vmem:[#allocation2 + $0x90] sm:$0xff]
  %v675 = vld [vmem:[#allocation2 + $0x98] sm:$0xff]
  %v676 = vld [vmem:[%s2 + $0x4] sm:$0x1]
  %v677 = vlaneseq
  %v678 = vshrl.u32 %v677, 7
  %v679 = vsub.s32 0, %v678
  %v680 = vrot.slane %v676, %v679
  %682 = vrot.lane.b32.xlu0 %v680, 8
  %v683 = vpop.permute.xlu0 %682
  %v685 = vmul.f32 %v672, %v683
  %v686 = vmul.f32 %v673, %v683
  %v687 = vmul.f32 %v674, %v683
  %v688 = vmul.f32 %v675, %v683
  %693 = vrot.lane.b32.xlu0 %v685, 120
  %v694 = vpop.permute.xlu0 %693
  %695 = vrot.lane.b32.xlu0 %v686, 120
  %v696 = vpop.permute.xlu0 %695
  %697 = vrot.lane.b32.xlu0 %v687, 120
  %v698 = vpop.permute.xlu0 %697
  %699 = vrot.lane.b32.xlu0 %v688, 120
  %v700 = vpop.permute.xlu0 %699
  %v705 = vadd.f32 %v668, %v694
  %v706 = vadd.f32 %v669, %v696
  %v707 = vadd.f32 %v670, %v698
  %v708 = vadd.f32 %v671, %v700
  %v709 = vld [vmem:[#allocation2 + $0xa0] sm:$0xff]
  %v710 = vld [vmem:[#allocation2 + $0xa8] sm:$0xff]
  %v711 = vld [vmem:[#allocation2 + $0xb0] sm:$0xff]
  %v712 = vld [vmem:[#allocation2 + $0xb8] sm:$0xff]
  %v713 = vld [vmem:[%s2 + $0x5] sm:$0x1]
  %v714 = vlaneseq
  %v715 = vshrl.u32 %v714, 7
  %v716 = vsub.s32 0, %v715
  %v717 = vrot.slane %v713, %v716
  %719 = vrot.lane.b32.xlu0 %v717, 9
  %v720 = vpop.permute.xlu0 %719
  %v722 = vmul.f32 %v709, %v720
  %v723 = vmul.f32 %v710, %v720
  %v724 = vmul.f32 %v711, %v720
  %v725 = vmul.f32 %v712, %v720
  %730 = vrot.lane.b32.xlu0 %v722, 119
  %v731 = vpop.permute.xlu0 %730
  %732 = vrot.lane.b32.xlu0 %v723, 119
  %v733 = vpop.permute.xlu0 %732
  %734 = vrot.lane.b32.xlu0 %v724, 119
  %v735 = vpop.permute.xlu0 %734
  %736 = vrot.lane.b32.xlu0 %v725, 119
  %v737 = vpop.permute.xlu0 %736
  %v742 = vadd.f32 %v705, %v731
  %v743 = vadd.f32 %v706, %v733
  %v744 = vadd.f32 %v707, %v735
  %v745 = vadd.f32 %v708, %v737
  %v746 = vld [vmem:[#allocation2 + $0xc0] sm:$0xff]
  %v747 = vld [vmem:[#allocation2 + $0xc8] sm:$0xff]
  %v748 = vld [vmem:[#allocation2 + $0xd0] sm:$0xff]
  %v749 = vld [vmem:[#allocation2 + $0xd8] sm:$0xff]
  %v750 = vld [vmem:[%s2 + $0x6] sm:$0x1]
  %v751 = vlaneseq
  %v752 = vshrl.u32 %v751, 7
  %v753 = vsub.s32 0, %v752
  %v754 = vrot.slane %v750, %v753
  %756 = vrot.lane.b32.xlu0 %v754, 14
  %v757 = vpop.permute.xlu0 %756
  %v759 = vmul.f32 %v746, %v757
  %v760 = vmul.f32 %v747, %v757
  %v761 = vmul.f32 %v748, %v757
  %v762 = vmul.f32 %v749, %v757
  %767 = vrot.lane.b32.xlu0 %v759, 114
  %v768 = vpop.permute.xlu0 %767
  %769 = vrot.lane.b32.xlu0 %v760, 114
  %v770 = vpop.permute.xlu0 %769
  %771 = vrot.lane.b32.xlu0 %v761, 114
  %v772 = vpop.permute.xlu0 %771
  %773 = vrot.lane.b32.xlu0 %v762, 114
  %v774 = vpop.permute.xlu0 %773
  %v779 = vadd.f32 %v742, %v768
  %v780 = vadd.f32 %v743, %v770
  %v781 = vadd.f32 %v744, %v772
  %v782 = vadd.f32 %v745, %v774
  %v783 = vld [vmem:[#allocation2 + $0xe0] sm:$0xff]
  %v784 = vld [vmem:[#allocation2 + $0xe8] sm:$0xff]
  %v785 = vld [vmem:[#allocation2 + $0xf0] sm:$0xff]
  %v786 = vld [vmem:[#allocation2 + $0xf8] sm:$0xff]
  %v787 = vld [vmem:[%s2 + $0x7] sm:$0x1]
  %v788 = vlaneseq
  %v789 = vshrl.u32 %v788, 7
  %v790 = vsub.s32 0, %v789
  %v791 = vrot.slane %v787, %v790
  %793 = vrot.lane.b32.xlu0 %v791, 15
  %v794 = vpop.permute.xlu0 %793
  %v796 = vmul.f32 %v783, %v794
  %v797 = vmul.f32 %v784, %v794
  %v798 = vmul.f32 %v785, %v794
  %v799 = vmul.f32 %v786, %v794
  %804 = vrot.lane.b32.xlu0 %v796, 113
  %v805 = vpop.permute.xlu0 %804
  %806 = vrot.lane.b32.xlu0 %v797, 113
  %v807 = vpop.permute.xlu0 %806
  %808 = vrot.lane.b32.xlu0 %v798, 113
  %v809 = vpop.permute.xlu0 %808
  %810 = vrot.lane.b32.xlu0 %v799, 113
  %v811 = vpop.permute.xlu0 %810
  %v816 = vadd.f32 %v779, %v805
  %v817 = vadd.f32 %v780, %v807
  %v818 = vadd.f32 %v781, %v809
  %v819 = vadd.f32 %v782, %v811
  %v820 = vld [vmem:[#allocation2 + $0x100] sm:$0xff]
  %v821 = vld [vmem:[#allocation2 + $0x108] sm:$0xff]
  %v822 = vld [vmem:[#allocation2 + $0x110] sm:$0xff]
  %v823 = vld [vmem:[#allocation2 + $0x118] sm:$0xff]
  %v824 = vld [vmem:[%s2 + $0x8] sm:$0x1]
  %v825 = vlaneseq
  %v826 = vshrl.u32 %v825, 7
  %v827 = vsub.s32 0, %v826
  %v828 = vrot.slane %v824, %v827
  %830 = vrot.lane.b32.xlu0 %v828, 16
  %v831 = vpop.permute.xlu0 %830
  %v833 = vmul.f32 %v820, %v831
  %v834 = vmul.f32 %v821, %v831
  %v835 = vmul.f32 %v822, %v831
  %v836 = vmul.f32 %v823, %v831
  %841 = vrot.lane.b32.xlu0 %v833, 112
  %v842 = vpop.permute.xlu0 %841
  %843 = vrot.lane.b32.xlu0 %v834, 112
  %v844 = vpop.permute.xlu0 %843
  %845 = vrot.lane.b32.xlu0 %v835, 112
  %v846 = vpop.permute.xlu0 %845
  %847 = vrot.lane.b32.xlu0 %v836, 112
  %v848 = vpop.permute.xlu0 %847
  %v853 = vadd.f32 %v816, %v842
  %v854 = vadd.f32 %v817, %v844
  %v855 = vadd.f32 %v818, %v846
  %v856 = vadd.f32 %v819, %v848
  %vm857 = vcmask 400384
  %858 = vst.msk [vmem:[%s3] sm:$0xff] %vm857, %v853
  %859 = vst.msk [vmem:[%s3 + $0x8] sm:$0xff] %vm857, %v854
  %860 = vst.msk [vmem:[%s3 + $0x10] sm:$0xff] %vm857, %v855
  %861 = vst.msk [vmem:[%s3 + $0x18] sm:$0xff] %vm857, %v856
  // Predicated region
  $region14: #{relu_conv2d.1} parent=0 // pred_check
    _
  $region15: #{relu_conv2d.1} parent=0 // pred_check_branch
    %863 = sbr.rel (0) target = $region17
  $region16: #{relu_conv2d.1} parent=0 // pred_region
    _
  $region17: #{relu_conv2d.1} parent=0 // pred_fallthru
    _
  // Predicated region
  $region18: #{relu_conv2d.1} parent=0 // pred_check
    _
  $region19: #{relu_conv2d.1} parent=0 // pred_check_branch
    %865 = sbr.rel (0) target = $region21
  $region20: #{relu_conv2d.1} parent=0 // pred_region
    _
  $region21: #{relu_conv2d.1} parent=0 // pred_fallthru
    _

</llo_original>
